<compile_context>
chip_gen: v7x
topology: tpu7x:2x2x1
jax: 0.10.0
libtpu: 0.0.40
codegen_flags: <defaults>
</compile_context>

<pallas_src>
import functools

import jax
import jax.numpy as jnp
from jax.experimental import pallas as pl
from jax.experimental.pallas import tpu as pltpu

EPS = 1e-5

_TAPS = ((0, 0), (0, 1), (1, 0), (1, 1))


def _conv_stats_kernel(xs_ref, w_ref, out_ref, stats_ref, *, per_tap):
    """Stride-2 4x4 conv (as 2x2 taps over a space-to-depth strip) + BatchNorm
    partial statistics for one output-row strip.

    xs_ref   : (1, tH+1, Wo+1, 4*Cin_pad) bf16  space-to-depth strip (+1 halo row)
    w_ref    : (4, 4*Cin_pad, Cpad)       bf16  weights packed per (a, b) tap
    out_ref  : (tH*Wo, Cpad)              bf16  conv output rows for this strip
    stats_ref: (1, 2, Cpad)               f32   row 0 = sum, row 1 = sum of squares
    """
    tH = xs_ref.shape[1] - 1
    Wo = xs_ref.shape[2] - 1
    K = xs_ref.shape[3]                 # 4 * Cin_pad, multiple of 128
    Cpad = w_ref.shape[2]
    M = tH * Wo

    if per_tap:
        # 4 accumulating MXU dots, K = 4*Cin_pad each; accumulation across taps
        # is a cheap f32 VPU add, no lane-axis concatenate / big patches temp.
        acc = None
        for t, (a, b) in enumerate(_TAPS):
            tap = xs_ref[0, a:a + tH, b:b + Wo, :].reshape(M, K)        # bf16
            part = jnp.dot(tap, w_ref[t], preferred_element_type=jnp.float32)
            acc = part if acc is None else acc + part
    else:
        # Tiny-Cin fallback: keep the packed single dot so the MXU contraction
        # dim is still reasonably deep (K_total = 16*Cin_pad).
        taps = [xs_ref[0, a:a + tH, b:b + Wo, :].reshape(M, K) for (a, b) in _TAPS]
        patches = jnp.concatenate(taps, axis=1)                         # (M, 4K) bf16
        acc = jnp.dot(patches, w_ref[...].reshape(4 * K, Cpad),
                      preferred_element_type=jnp.float32)

    # Single-pass BatchNorm partials for this strip (f32, compact (2, Cpad) store).
    stats_ref[0] = jnp.concatenate(
        [jnp.sum(acc, axis=0, keepdims=True),
         jnp.sum(acc * acc, axis=0, keepdims=True)], axis=0)

    out_ref[...] = acc.astype(out_ref.dtype)                            # bf16 store


def _bn_lrelu_kernel(y_ref, scale_ref, shift_ref, out_ref, *, alpha):
    """Folded BatchNorm affine + LeakyReLU on a lane-dense row tile (bf16 in, f32 out)."""
    y = y_ref[...].astype(jnp.float32) * scale_ref[...] + shift_ref[...]
    out_ref[...] = jnp.where(y > 0, y, alpha * y)


def _device_knobs():
    """(mxu_contraction_width, vmem_limit_bytes) chosen from the TPU generation."""
    try:
        kind = jax.devices()[0].device_kind.lower()
    except Exception:  # pragma: no cover - defensive
        kind = ""
    if "v5" in kind:
        return 128, 96 * 1024 * 1024        # 128-wide MXU, 128 MiB physical VMEM
    if "v6" in kind:
        return 256, 96 * 1024 * 1024        # 256-wide MXU, 128 MiB physical VMEM
    return 256, 48 * 1024 * 1024            # v7x / unknown: 64 MiB physical VMEM


def _pick_tile_h(Ho, Wo, k4, cpad, vmem_limit):
    """Largest strip height (divisor of Ho, tile_h*Wo % 8 == 0) whose per-step
    working set fits the VMEM budget (double-buffered in/out + weights + temps)."""
    valid = [d for d in range(1, Ho + 1) if Ho % d == 0 and (d * Wo) % 8 == 0]
    assert valid, "need some tile_h with tile_h * Wo a multiple of 8"
    budget = int(0.7 * vmem_limit)
    for d in sorted(valid, reverse=True):
        mt = d * Wo
        if mt > 4096:
            continue
        est = (2 * (d + 1) * (Wo + 1) * k4 * 2      # input strip, double-buffered bf16
               + 2 * mt * cpad * 2                   # conv_out tile, double-buffered bf16
               + 2 * 4 * k4 * cpad * 2               # packed weight (charged x2 buffers)
               + mt * cpad * 4                       # f32 accumulator
               + 2 * mt * k4 * 2                     # live bf16 tap slices
               + mt * cpad * 2                       # bf16 output cast
               + 2 * 2 * cpad * 4                    # stats
               + (1 << 20))                          # slack
        if est <= budget:
            return d
    return min(valid)


@functools.partial(jax.jit, static_argnames=("alpha",))
def conv_bn_lrelu(x_nchw, w, b, gamma, beta, *, alpha=0.2):
    """Forward of ConvBnLReLU: Conv2d(Cin, Cout, 4, 2, 1) -> BatchNorm2d
    (training-mode batch statistics) -> LeakyReLU(alpha).

    x_nchw: (N, Cin, H, W) f32.  w: OIHW (Cout, Cin, 4, 4).  b/gamma/beta: (Cout,).
    Returns (N, Cout, H//2, W//2) f32.

    Note: the conv bias `b` cancels exactly under training-mode BatchNorm
    (mean subtraction), so it is not used by the kernels.
    """
    N, Cin, H, W = x_nchw.shape
    Cout = w.shape[0]
    assert H % 2 == 0 and W % 2 == 0, "H and W must be even for k=4, s=2, p=1"
    Ho, Wo = H // 2, W // 2

    # Lane-dense channel padding: 4*Cin_pad and Cpad are multiples of 128.
    Cin_pad = ((max(Cin, 1) + 31) // 32) * 32
    Cpad = ((Cout + 127) // 128) * 128
    K4 = 4 * Cin_pad

    mxu_k, vmem_limit = _device_knobs()
    per_tap = K4 >= mxu_k                     # packed single dot only for tiny Cin

    tile_h = _pick_tile_h(Ho, Wo, K4, Cpad, vmem_limit)
    S = Ho // tile_h                          # strips per image
    G = N * S                                 # pass-1 grid size (even when N is even
                                              # -> balances v7x's two TensorCores)
    M_tile = tile_h * Wo
    M_total = N * Ho * Wo

    # ---- layout glue (XLA): NCHW->NHWC, pad (spatial + Cin), space-to-depth(2),
    # ---- halo strips, bf16 -------------------------------------------------------
    x = jnp.transpose(x_nchw, (0, 2, 3, 1)).astype(jnp.float32)       # (N,H,W,Cin)
    xp = jnp.pad(x, ((0, 0), (1, 1), (1, 1), (0, Cin_pad - Cin)))     # (N,H+2,W+2,Cin_pad)
    xs2d = xp.reshape(N, Ho + 1, 2, Wo + 1, 2, Cin_pad)
    xs2d = jnp.transpose(xs2d, (0, 1, 3, 2, 4, 5))
    xs2d = xs2d.reshape(N, Ho + 1, Wo + 1, K4)
    ridx = jnp.arange(S)[:, None] * tile_h + jnp.arange(tile_h + 1)[None, :]
    xs_strips = xs2d[:, ridx]                                         # (N,S,tH+1,Wo+1,K4)
    xs_strips = xs_strips.reshape(G, tile_h + 1, Wo + 1, K4).astype(jnp.bfloat16)

    # Pack 4x4 taps: (ky,kx) = (2a+py, 2b+px); tap-major layout (a,b) x (py,px,ci).
    w_p = jnp.pad(w.astype(jnp.float32),
                  ((0, Cpad - Cout), (0, Cin_pad - Cin), (0, 0), (0, 0)))
    wk = jnp.transpose(w_p, (2, 3, 1, 0))                             # (ky,kx,ci,co)
    wk = wk.reshape(2, 2, 2, 2, Cin_pad, Cpad)                        # (a,py,b,px,ci,co)
    wk = jnp.transpose(wk, (0, 2, 1, 3, 4, 5))                        # (a,b,py,px,ci,co)
    w_packed = wk.reshape(4, K4, Cpad).astype(jnp.bfloat16)

    # ---- pass 1: conv + BN partial stats (tiled, parallel, pipelined) ------------
    flops = 2 * M_total * (4 * K4) * Cpad
    bytes_accessed = (int(xs_strips.size) * 2 + int(w_packed.size) * 2
                      + M_total * Cpad * 2 + G * 2 * Cpad * 4)
    conv_out, stats = pl.pallas_call(
        functools.partial(_conv_stats_kernel, per_tap=per_tap),
        out_shape=(jax.ShapeDtypeStruct((M_total, Cpad), jnp.bfloat16),
                   jax.ShapeDtypeStruct((G, 2, Cpad), jnp.float32)),
        grid=(G,),
        in_specs=[
            pl.BlockSpec((1, tile_h + 1, Wo + 1, K4), lambda g: (g, 0, 0, 0)),
            pl.BlockSpec((4, K4, Cpad), lambda g: (0, 0, 0)),   # grid-invariant weight
        ],
        out_specs=(
            pl.BlockSpec((M_tile, Cpad), lambda g: (g, 0)),
            pl.BlockSpec((1, 2, Cpad), lambda g: (g, 0, 0)),
        ),
        compiler_params=pltpu.CompilerParams(
            dimension_semantics=("parallel",),
            vmem_limit_bytes=vmem_limit),
        cost_estimate=pl.CostEstimate(flops=flops, transcendentals=0,
                                      bytes_accessed=bytes_accessed),
    )(xs_strips, w_packed)

    # ---- fold batch statistics into per-channel scale/shift (tiny, XLA) ----------
    mean = jnp.sum(stats[:, 0, :], axis=0) / M_total
    var = jnp.maximum(jnp.sum(stats[:, 1, :], axis=0) / M_total - mean * mean, 0.0)
    inv = jax.lax.rsqrt(var + EPS)                                    # biased variance
    gamma_p = jnp.pad(gamma.astype(jnp.float32), (0, Cpad - Cout))
    beta_p = jnp.pad(beta.astype(jnp.float32), (0, Cpad - Cout))
    scale = (gamma_p * inv).reshape(1, Cpad)
    shift = (beta_p - mean * gamma_p * inv).reshape(1, Cpad)          # conv bias cancels

    # ---- pass 2: normalize + LeakyReLU (lane-dense HBM streaming) ----------------
    tile_m = M_total
    for cand in (2048, 1024, 512, 256, 128, 64, 32, 16, 8):
        if M_total % cand == 0:
            tile_m = cand
            break
    out_slab = pl.pallas_call(
        functools.partial(_bn_lrelu_kernel, alpha=alpha),
        out_shape=jax.ShapeDtypeStruct((M_total, Cpad), jnp.float32),
        grid=(M_total // tile_m,),
        in_specs=[
            pl.BlockSpec((tile_m, Cpad), lambda g: (g, 0)),
            pl.BlockSpec((1, Cpad), lambda g: (0, 0)),
            pl.BlockSpec((1, Cpad), lambda g: (0, 0)),
        ],
        out_specs=pl.BlockSpec((tile_m, Cpad), lambda g: (g, 0)),
        compiler_params=pltpu.CompilerParams(
            dimension_semantics=("parallel",),
            vmem_limit_bytes=vmem_limit),
    )(conv_out, scale, shift)

    # ---- layout glue: strip channel padding, back to NCHW ------------------------
    out = out_slab[:, :Cout].reshape(N, Ho, Wo, Cout)
    return jnp.transpose(out, (0, 3, 1, 2))


def _reference(x, w, b, gamma, beta, alpha):
    """Pure-JAX replica of the PyTorch forward (training-mode BatchNorm)."""
    y = jax.lax.conv_general_dilated(
        x, w, window_strides=(2, 2), padding=((1, 1), (1, 1)),
        dimension_numbers=("NCHW", "OIHW", "NCHW"))
    y = y + b[None, :, None, None]
    mean = y.mean(axis=(0, 2, 3), keepdims=True)
    var = ((y - mean) ** 2).mean(axis=(0, 2, 3), keepdims=True)
    y = (y - mean) * jax.lax.rsqrt(var + EPS) * gamma[None, :, None, None] \
        + beta[None, :, None, None]
    return jnp.where(y > 0, y, alpha * y)


if __name__ == "__main__":
    # TODO(synk): BatchNorm2d running_mean/running_var buffer updates (a training
    # side effect) are not modeled; the forward uses batch stats as in train mode,
    # matching the PyTorch module right after construction.  If eval-mode running
    # stats are ever added, the conv bias must be restored in the kernels.
    N, Cin, Cout, H, W = 2, 4, 8, 16, 16
    alpha = 0.2

    key = jax.random.PRNGKey(0)
    kx, kw, kb, kg, kbe = jax.random.split(key, 5)
    x = jax.random.normal(kx, (N, Cin, H, W), jnp.float32)
    w = 0.1 * jax.random.normal(kw, (Cout, Cin, 4, 4), jnp.float32)
    b = 0.1 * jax.random.normal(kb, (Cout,), jnp.float32)
    gamma = 1.0 + 0.1 * jax.random.normal(kg, (Cout,), jnp.float32)
    beta = 0.1 * jax.random.normal(kbe, (Cout,), jnp.float32)

    out = conv_bn_lrelu(x, w, b, gamma, beta, alpha=alpha)
    out = jax.block_until_ready(out)

    ref = _reference(x, w, b, gamma, beta, alpha)
    assert out.shape == (N, Cout, H // 2, W // 2), out.shape
    max_err = float(jnp.max(jnp.abs(out - ref)))
    assert jnp.allclose(out, ref, atol=2e-2, rtol=2e-2), (
        f"mismatch vs reference (max |diff| = {max_err})")

    print("KERNEL_OK")
</pallas_src>

<mosaic_0001>
module attributes {stable_mosaic.version = 11 : i64} {
  func.func @_conv_stats_kernel(%arg0: i32, %arg1: memref<1x9x9x128xbf16, #tpu.memory_space<vmem>>, %arg2: memref<4x128x128xbf16, #tpu.memory_space<vmem>>, %arg3: memref<64x128xbf16, #tpu.memory_space<vmem>>, %arg4: memref<1x2x128xf32, #tpu.memory_space<vmem>>) attributes {dimension_semantics = [#tpu.dimension_semantics<parallel>], iteration_bounds = array<i64: 2>, scalar_prefetch = 0 : i64, scratch_operands = 0 : i64, tpu.core_type = #tpu.core_type<tc>, window_params = [{transform_indices = @transform_0, window_bounds = array<i64: 1, 9, 9, 128>}, {pipeline_mode = #tpu.pipeline_mode<synchronous>, transform_indices = @transform_1, window_bounds = array<i64: 4, 128, 128>}, {transform_indices = @transform_2, window_bounds = array<i64: 64, 128>}, {transform_indices = @transform_3, window_bounds = array<i64: 1, 2, 128>}]} {
    %c0 = arith.constant 0 : index
    %c0_0 = arith.constant 0 : index
    %c0_1 = arith.constant 0 : index
    %c0_2 = arith.constant 0 : index
    %0 = vector.load %arg1[%c0, %c0_0, %c0_1, %c0_2] : memref<1x9x9x128xbf16, #tpu.memory_space<vmem>>, vector<1x8x8x128xbf16>
    %1 = vector.shape_cast %0 : vector<1x8x8x128xbf16> to vector<8x8x128xbf16>
    %2 = vector.shape_cast %1 : vector<8x8x128xbf16> to vector<64x128xbf16>
    %c0_3 = arith.constant 0 : index
    %c0_4 = arith.constant 0 : index
    %c1 = arith.constant 1 : index
    %c0_5 = arith.constant 0 : index
    %3 = vector.load %arg1[%c0_3, %c0_4, %c1, %c0_5] : memref<1x9x9x128xbf16, #tpu.memory_space<vmem>>, vector<1x8x8x128xbf16>
    %4 = vector.shape_cast %3 : vector<1x8x8x128xbf16> to vector<8x8x128xbf16>
    %5 = vector.shape_cast %4 : vector<8x8x128xbf16> to vector<64x128xbf16>
    %c0_6 = arith.constant 0 : index
    %c1_7 = arith.constant 1 : index
    %c0_8 = arith.constant 0 : index
    %c0_9 = arith.constant 0 : index
    %6 = vector.load %arg1[%c0_6, %c1_7, %c0_8, %c0_9] : memref<1x9x9x128xbf16, #tpu.memory_space<vmem>>, vector<1x8x8x128xbf16>
    %7 = vector.shape_cast %6 : vector<1x8x8x128xbf16> to vector<8x8x128xbf16>
    %8 = vector.shape_cast %7 : vector<8x8x128xbf16> to vector<64x128xbf16>
    %c0_10 = arith.constant 0 : index
    %c1_11 = arith.constant 1 : index
    %c1_12 = arith.constant 1 : index
    %c0_13 = arith.constant 0 : index
    %9 = vector.load %arg1[%c0_10, %c1_11, %c1_12, %c0_13] : memref<1x9x9x128xbf16, #tpu.memory_space<vmem>>, vector<1x8x8x128xbf16>
    %10 = vector.shape_cast %9 : vector<1x8x8x128xbf16> to vector<8x8x128xbf16>
    %11 = vector.shape_cast %10 : vector<8x8x128xbf16> to vector<64x128xbf16>
    %12 = tpu.concatenate %2, %5, %8, %11 in 1 : vector<64x128xbf16>, vector<64x128xbf16>, vector<64x128xbf16>, vector<64x128xbf16> -> vector<64x512xbf16>
    %c0_14 = arith.constant 0 : index
    %c0_15 = arith.constant 0 : index
    %c0_16 = arith.constant 0 : index
    %13 = vector.load %arg2[%c0_14, %c0_15, %c0_16] : memref<4x128x128xbf16, #tpu.memory_space<vmem>>, vector<4x128x128xbf16>
    %14 = vector.shape_cast %13 : vector<4x128x128xbf16> to vector<512x128xbf16>
    %cst = arith.constant dense<0.000000e+00> : vector<64x128xf32>
    %15 = tpu.matmul %12, %14, %cst {dimension_numbers = #tpu.dot_dimension_numbers<[1], [0], [0], [1], [0, 0, 1, 1], [], []>} : vector<64x512xbf16>, vector<512x128xbf16>, vector<64x128xf32> -> vector<64x128xf32>
    %cst_17 = arith.constant dense<0.000000e+00> : vector<128xf32>
    %16 = vector.multi_reduction <add>, %15, %cst_17 [0] : vector<64x128xf32> to vector<128xf32>
    %17 = vector.shape_cast %16 : vector<128xf32> to vector<1x128xf32>
    %18 = arith.mulf %15, %15 : vector<64x128xf32>
    %cst_18 = arith.constant dense<0.000000e+00> : vector<128xf32>
    %19 = vector.multi_reduction <add>, %18, %cst_18 [0] : vector<64x128xf32> to vector<128xf32>
    %20 = vector.shape_cast %19 : vector<128xf32> to vector<1x128xf32>
    %21 = tpu.concatenate %17, %20 in 0 : vector<1x128xf32>, vector<1x128xf32> -> vector<2x128xf32>
    %c0_19 = arith.constant 0 : index
    %c0_20 = arith.constant 0 : index
    %c0_21 = arith.constant 0 : index
    %22 = vector.load %arg4[%c0_19, %c0_20, %c0_21] : memref<1x2x128xf32, #tpu.memory_space<vmem>>, vector<1x2x128xf32>
    %23 = vector.shape_cast %22 : vector<1x2x128xf32> to vector<2x128xf32>
    %24 = vector.shape_cast %21 : vector<2x128xf32> to vector<1x2x128xf32>
    tpu.vector_store %arg4[%c0_19, %c0_20, %c0_21], %24 {strides = array<i32>} : memref<1x2x128xf32, #tpu.memory_space<vmem>>, vector<1x2x128xf32>,
    %25 = arith.truncf %15 : vector<64x128xf32> to vector<64x128xbf16>
    %c0_22 = arith.constant 0 : index
    %c0_23 = arith.constant 0 : index
    %26 = vector.load %arg3[%c0_22, %c0_23] : memref<64x128xbf16, #tpu.memory_space<vmem>>, vector<64x128xbf16>
    tpu.vector_store %arg3[%c0_22, %c0_23], %25 {strides = array<i32>} : memref<64x128xbf16, #tpu.memory_space<vmem>>, vector<64x128xbf16>,
    return
  }
  func.func @transform_0(%arg0: i32) -> (i32, i32, i32, i32) {
    %c0_i32 = arith.constant 0 : i32
    %c0_i32_0 = arith.constant 0 : i32
    %c0_i32_1 = arith.constant 0 : i32
    %c0_i32_2 = arith.constant 0 : i32
    return %arg0, %c0_i32, %c0_i32_0, %c0_i32_1 : i32, i32, i32, i32
  }
  func.func @transform_1(%arg0: i32) -> (i32, i32, i32) {
    %c0_i32 = arith.constant 0 : i32
    %c0_i32_0 = arith.constant 0 : i32
    %c0_i32_1 = arith.constant 0 : i32
    %c0_i32_2 = arith.constant 0 : i32
    return %c0_i32, %c0_i32_0, %c0_i32_1 : i32, i32, i32
  }
  func.func @transform_2(%arg0: i32) -> (i32, i32) {
    %c0_i32 = arith.constant 0 : i32
    %c0_i32_0 = arith.constant 0 : i32
    return %arg0, %c0_i32 : i32, i32
  }
  func.func @transform_3(%arg0: i32) -> (i32, i32, i32) {
    %c0_i32 = arith.constant 0 : i32
    %c0_i32_0 = arith.constant 0 : i32
    %c0_i32_1 = arith.constant 0 : i32
    return %arg0, %c0_i32, %c0_i32_0 : i32, i32, i32
  }
}

module attributes {stable_mosaic.version = 11 : i64} {
  func.func @_bn_lrelu_kernel(%arg0: i32, %arg1: memref<128x128xbf16, #tpu.memory_space<vmem>>, %arg2: memref<1x128xf32, #tpu.memory_space<vmem>>, %arg3: memref<1x128xf32, #tpu.memory_space<vmem>>, %arg4: memref<128x128xf32, #tpu.memory_space<vmem>>) attributes {dimension_semantics = [#tpu.dimension_semantics<parallel>], iteration_bounds = array<i64: 1>, scalar_prefetch = 0 : i64, scratch_operands = 0 : i64, tpu.core_type = #tpu.core_type<tc>, window_params = [{transform_indices = @transform_0, window_bounds = array<i64: 128, 128>}, {pipeline_mode = #tpu.pipeline_mode<synchronous>, transform_indices = @transform_1, window_bounds = array<i64: 1, 128>}, {pipeline_mode = #tpu.pipeline_mode<synchronous>, transform_indices = @transform_2, window_bounds = array<i64: 1, 128>}, {transform_indices = @transform_3, window_bounds = array<i64: 128, 128>}]} {
    %c0 = arith.constant 0 : index
    %c0_0 = arith.constant 0 : index
    %0 = vector.load %arg1[%c0, %c0_0] : memref<128x128xbf16, #tpu.memory_space<vmem>>, vector<128x128xbf16>
    %1 = arith.extf %0 : vector<128x128xbf16> to vector<128x128xf32>
    %c0_1 = arith.constant 0 : index
    %c0_2 = arith.constant 0 : index
    %2 = vector.load %arg2[%c0_1, %c0_2] : memref<1x128xf32, #tpu.memory_space<vmem>>, vector<1x128xf32>
    %3 = vector.broadcast %2 : vector<1x128xf32> to vector<128x128xf32>
    %4 = arith.mulf %1, %3 : vector<128x128xf32>
    %c0_3 = arith.constant 0 : index
    %c0_4 = arith.constant 0 : index
    %5 = vector.load %arg3[%c0_3, %c0_4] : memref<1x128xf32, #tpu.memory_space<vmem>>, vector<1x128xf32>
    %6 = vector.broadcast %5 : vector<1x128xf32> to vector<128x128xf32>
    %7 = arith.addf %4, %6 : vector<128x128xf32>
    %cst = arith.constant 0.000000e+00 : f32
    %8 = vector.broadcast %cst : f32 to vector<128x128xf32>
    %9 = arith.cmpf ogt, %7, %8 : vector<128x128xf32>
    %cst_5 = arith.constant 2.000000e-01 : f32
    %10 = vector.broadcast %cst_5 : f32 to vector<128x128xf32>
    %11 = arith.mulf %10, %7 : vector<128x128xf32>
    %12 = arith.select %9, %7, %11 : vector<128x128xi1>, vector<128x128xf32>
    %c0_6 = arith.constant 0 : index
    %c0_7 = arith.constant 0 : index
    %13 = vector.load %arg4[%c0_6, %c0_7] : memref<128x128xf32, #tpu.memory_space<vmem>>, vector<128x128xf32>
    tpu.vector_store %arg4[%c0_6, %c0_7], %12 {strides = array<i32>} : memref<128x128xf32, #tpu.memory_space<vmem>>, vector<128x128xf32>,
    return
  }
  func.func @transform_0(%arg0: i32) -> (i32, i32) {
    %c0_i32 = arith.constant 0 : i32
    %c0_i32_0 = arith.constant 0 : i32
    return %arg0, %c0_i32 : i32, i32
  }
  func.func @transform_1(%arg0: i32) -> (i32, i32) {
    %c0_i32 = arith.constant 0 : i32
    %c0_i32_0 = arith.constant 0 : i32
    %c0_i32_1 = arith.constant 0 : i32
    return %c0_i32, %c0_i32_0 : i32, i32
  }
  func.func @transform_2(%arg0: i32) -> (i32, i32) {
    %c0_i32 = arith.constant 0 : i32
    %c0_i32_0 = arith.constant 0 : i32
    %c0_i32_1 = arith.constant 0 : i32
    return %c0_i32, %c0_i32_0 : i32, i32
  }
  func.func @transform_3(%arg0: i32) -> (i32, i32) {
    %c0_i32 = arith.constant 0 : i32
    %c0_i32_0 = arith.constant 0 : i32
    return %arg0, %c0_i32 : i32, i32
  }
}

</mosaic_0001>

<llo_original>
// kernel: conv_bn_lrelu.3
$region0: #{conv_bn_lrelu.3}
  #allocation0 [shape = 'u32[]', space=smem, size = 0x4, offset = 0x4, fixed_abs, tag = 'smem constant byte address 0x4 - core index']
  #allocation1 [shape = 'u32[144,128]{1,0:T(1,128)}', space=vmem, size = 0x12000, scoped, tag = 'internal scratch']
  %s0 = inlined_call_operand.vmem [shape: bf16[128,128], index: 0, kind: input, shape index: {}]
  %s1 = inlined_call_operand.vmem [shape: f32[1,128], index: 1, kind: input, shape index: {}]
  %s2 = inlined_call_operand.vmem [shape: f32[1,128], index: 2, kind: input, shape index: {}]
  %s3 = inlined_call_operand.vmem [shape: f32[128,128], index: 3, kind: output, shape index: {}]
  %s4 = sld [smem:[#allocation0]]
  $region22: #{conv_bn_lrelu.3} parent=0
    _
  %s6 = ssub.s32 1, %s4
  %s7 = scalar_select 0, %s6, %s4
  // Predicated region
  $region2: #{conv_bn_lrelu.3} parent=0 // pred_check
    _
  $region3: #{conv_bn_lrelu.3} parent=0 // pred_check_branch
    %9 = sbr.rel (0) target = $region5
  $region4: #{conv_bn_lrelu.3} parent=0 // pred_region
    _
  $region5: #{conv_bn_lrelu.3} parent=0 // pred_fallthru
    _
  // Predicated region
  $region6: #{conv_bn_lrelu.3} parent=0 // pred_check
    _
  $region7: #{conv_bn_lrelu.3} parent=0 // pred_check_branch
    %11 = sbr.rel (0) target = $region9
  $region8: #{conv_bn_lrelu.3} parent=0 // pred_region
    _
  $region9: #{conv_bn_lrelu.3} parent=0 // pred_fallthru
    _
  // Predicated region
  $region10: #{conv_bn_lrelu.3} parent=0 // pred_check
    _
  $region11: #{conv_bn_lrelu.3} parent=0 // pred_check_branch
    %13 = sbr.rel (0) target = $region13
  $region12: #{conv_bn_lrelu.3} parent=0 // pred_region
    _
  $region13: #{conv_bn_lrelu.3} parent=0 // pred_fallthru
    _
  %v14 = vld [vmem:[%s0] sm:$0xf]
  %v15 = vld [vmem:[%s0 + $0x4] sm:$0xf]
  %v16 = vld [vmem:[%s0 + $0x8] sm:$0xf]
  %v17 = vld [vmem:[%s0 + $0xc] sm:$0xf]
  %v18 = vld [vmem:[%s0 + $0x10] sm:$0xf]
  %v19 = vld [vmem:[%s0 + $0x14] sm:$0xf]
  %v20 = vld [vmem:[%s0 + $0x18] sm:$0xf]
  %v21 = vld [vmem:[%s0 + $0x1c] sm:$0xf]
  %v22 = vld [vmem:[%s0 + $0x20] sm:$0xf]
  %v23 = vld [vmem:[%s0 + $0x24] sm:$0xf]
  %v24 = vld [vmem:[%s0 + $0x28] sm:$0xf]
  %v25 = vld [vmem:[%s0 + $0x2c] sm:$0xf]
  %v26 = vld [vmem:[%s0 + $0x30] sm:$0xf]
  %v27 = vld [vmem:[%s0 + $0x34] sm:$0xf]
  %v28 = vld [vmem:[%s0 + $0x38] sm:$0xf]
  %v29 = vld [vmem:[%s0 + $0x3c] sm:$0xf]
  %v30 = vunpack.c.l.bf16 %v14
  %v31 = vunpack.c.l.bf16 %v15
  %v32 = vunpack.c.l.bf16 %v16
  %v33 = vunpack.c.l.bf16 %v17
  %v34 = vunpack.c.l.bf16 %v18
  %v35 = vunpack.c.l.bf16 %v19
  %v36 = vunpack.c.l.bf16 %v20
  %v37 = vunpack.c.l.bf16 %v21
  %v38 = vunpack.c.l.bf16 %v22
  %v39 = vunpack.c.l.bf16 %v23
  %v40 = vunpack.c.l.bf16 %v24
  %v41 = vunpack.c.l.bf16 %v25
  %v42 = vunpack.c.l.bf16 %v26
  %v43 = vunpack.c.l.bf16 %v27
  %v44 = vunpack.c.l.bf16 %v28
  %v45 = vunpack.c.l.bf16 %v29
  %v46 = vld [vmem:[%s1] sm:$0x1]
  %v48 = vlaneseq
  %v49 = vshrl.u32 %v48, 7
  %v50 = vsub.s32 0, %v49
  %v51 = vrot.slane %v46, %v50
  %v53 = vmul.f32 %v30, %v51
  %v54 = vmul.f32 %v31, %v51
  %v55 = vmul.f32 %v32, %v51
  %v56 = vmul.f32 %v33, %v51
  %v57 = vmul.f32 %v34, %v51
  %v58 = vmul.f32 %v35, %v51
  %v59 = vmul.f32 %v36, %v51
  %v60 = vmul.f32 %v37, %v51
  %v61 = vmul.f32 %v38, %v51
  %v62 = vmul.f32 %v39, %v51
  %v63 = vmul.f32 %v40, %v51
  %v64 = vmul.f32 %v41, %v51
  %v65 = vmul.f32 %v42, %v51
  %v66 = vmul.f32 %v43, %v51
  %v67 = vmul.f32 %v44, %v51
  %v68 = vmul.f32 %v45, %v51
  %v69 = vld [vmem:[%s2] sm:$0x1]
  %v71 = vlaneseq
  %v72 = vshrl.u32 %v71, 7
  %v73 = vsub.s32 0, %v72
  %v74 = vrot.slane %v69, %v73
  %v76 = vadd.f32 %v53, %v74
  %v77 = vadd.f32 %v54, %v74
  %v78 = vadd.f32 %v55, %v74
  %v79 = vadd.f32 %v56, %v74
  %v80 = vadd.f32 %v57, %v74
  %v81 = vadd.f32 %v58, %v74
  %v82 = vadd.f32 %v59, %v74
  %v83 = vadd.f32 %v60, %v74
  %v84 = vadd.f32 %v61, %v74
  %v85 = vadd.f32 %v62, %v74
  %v86 = vadd.f32 %v63, %v74
  %v87 = vadd.f32 %v64, %v74
  %v88 = vadd.f32 %v65, %v74
  %v89 = vadd.f32 %v66, %v74
  %v90 = vadd.f32 %v67, %v74
  %v91 = vadd.f32 %v68, %v74
  %vm92 = vcmp.gt.f32.partialorder %v76, 0.0
  %vm93 = vcmp.gt.f32.partialorder %v77, 0.0
  %vm94 = vcmp.gt.f32.partialorder %v78, 0.0
  %vm95 = vcmp.gt.f32.partialorder %v79, 0.0
  %vm96 = vcmp.gt.f32.partialorder %v80, 0.0
  %vm97 = vcmp.gt.f32.partialorder %v81, 0.0
  %vm98 = vcmp.gt.f32.partialorder %v82, 0.0
  %vm99 = vcmp.gt.f32.partialorder %v83, 0.0
  %vm100 = vcmp.gt.f32.partialorder %v84, 0.0
  %vm101 = vcmp.gt.f32.partialorder %v85, 0.0
  %vm102 = vcmp.gt.f32.partialorder %v86, 0.0
  %vm103 = vcmp.gt.f32.partialorder %v87, 0.0
  %vm104 = vcmp.gt.f32.partialorder %v88, 0.0
  %vm105 = vcmp.gt.f32.partialorder %v89, 0.0
  %vm106 = vcmp.gt.f32.partialorder %v90, 0.0
  %vm107 = vcmp.gt.f32.partialorder %v91, 0.0
  %v108 = vmul.f32 %v76, 0.2
  %v109 = vmul.f32 %v77, 0.2
  %v110 = vmul.f32 %v78, 0.2
  %v111 = vmul.f32 %v79, 0.2
  %v112 = vmul.f32 %v80, 0.2
  %v113 = vmul.f32 %v81, 0.2
  %v114 = vmul.f32 %v82, 0.2
  %v115 = vmul.f32 %v83, 0.2
  %v116 = vmul.f32 %v84, 0.2
  %v117 = vmul.f32 %v85, 0.2
  %v118 = vmul.f32 %v86, 0.2
  %v119 = vmul.f32 %v87, 0.2
  %v120 = vmul.f32 %v88, 0.2
  %v121 = vmul.f32 %v89, 0.2
  %v122 = vmul.f32 %v90, 0.2
  %v123 = vmul.f32 %v91, 0.2
  %v124 = vsel %vm92, %v76, %v108
  %v125 = vsel %vm93, %v77, %v109
  %v126 = vsel %vm94, %v78, %v110
  %v127 = vsel %vm95, %v79, %v111
  %v128 = vsel %vm96, %v80, %v112
  %v129 = vsel %vm97, %v81, %v113
  %v130 = vsel %vm98, %v82, %v114
  %v131 = vsel %vm99, %v83, %v115
  %v132 = vsel %vm100, %v84, %v116
  %v133 = vsel %vm101, %v85, %v117
  %v134 = vsel %vm102, %v86, %v118
  %v135 = vsel %vm103, %v87, %v119
  %v136 = vsel %vm104, %v88, %v120
  %v137 = vsel %vm105, %v89, %v121
  %v138 = vsel %vm106, %v90, %v122
  %v139 = vsel %vm107, %v91, %v123
  %140 = vst [vmem:[%s3] sm:$0xff] %v124
  %141 = vst [vmem:[%s3 + $0x8] sm:$0xff] %v125
  %142 = vst [vmem:[%s3 + $0x10] sm:$0xff] %v126
  %143 = vst [vmem:[%s3 + $0x18] sm:$0xff] %v127
  %144 = vst [vmem:[%s3 + $0x20] sm:$0xff] %v128
  %145 = vst [vmem:[%s3 + $0x28] sm:$0xff] %v129
  %146 = vst [vmem:[%s3 + $0x30] sm:$0xff] %v130
  %147 = vst [vmem:[%s3 + $0x38] sm:$0xff] %v131
  %148 = vst [vmem:[%s3 + $0x40] sm:$0xff] %v132
  %149 = vst [vmem:[%s3 + $0x48] sm:$0xff] %v133
  %150 = vst [vmem:[%s3 + $0x50] sm:$0xff] %v134
  %151 = vst [vmem:[%s3 + $0x58] sm:$0xff] %v135
  %152 = vst [vmem:[%s3 + $0x60] sm:$0xff] %v136
  %153 = vst [vmem:[%s3 + $0x68] sm:$0xff] %v137
  %154 = vst [vmem:[%s3 + $0x70] sm:$0xff] %v138
  %155 = vst [vmem:[%s3 + $0x78] sm:$0xff] %v139
  // Predicated region
  $region14: #{conv_bn_lrelu.3} parent=0 // pred_check
    _
  $region15: #{conv_bn_lrelu.3} parent=0 // pred_check_branch
    %157 = sbr.rel (0) target = $region17
  $region16: #{conv_bn_lrelu.3} parent=0 // pred_region
    _
  $region17: #{conv_bn_lrelu.3} parent=0 // pred_fallthru
    _
  // Predicated region
  $region18: #{conv_bn_lrelu.3} parent=0 // pred_check
    _
  $region19: #{conv_bn_lrelu.3} parent=0 // pred_check_branch
    %159 = sbr.rel (0) target = $region21
  $region20: #{conv_bn_lrelu.3} parent=0 // pred_region
    _
  $region21: #{conv_bn_lrelu.3} parent=0 // pred_fallthru
    _

// kernel: conv_bn_lrelu.2
$region0: #{conv_bn_lrelu.2}
  #allocation0 [shape = 'u32[]', space=smem, size = 0x4, offset = 0x4, fixed_abs, tag = 'smem constant byte address 0x4 - core index']
  #allocation1 [shape = 'u32[144,128]{1,0:T(1,128)}', space=vmem, size = 0x12000, scoped, tag = 'internal scratch']
  %s0 = inlined_call_operand.vmem [shape: bf16[2,9,9,128], index: 0, kind: input, shape index: {}]
  %s1 = inlined_call_operand.vmem [shape: bf16[4,128,128], index: 1, kind: input, shape index: {}]
  %s2 = inlined_call_operand.vmem [shape: bf16[128,128], index: 2, kind: output, shape index: {0}]
  %s3 = inlined_call_operand.vmem [shape: f32[2,2,128], index: 3, kind: output, shape index: {1}]
  %4 = xla_tuple %s2, %s3
  %s5 = sld [smem:[#allocation0]]
  $region49: #{conv_bn_lrelu.2} parent=0
    _
  %s7 = ssub.s32 1, %s5
  %s8 = scalar_select 0, %s7, %s5
  loop: start=0, step=1, limit=4
  $region2: #{conv_bn_lrelu.2} parent=0 // loop_pre_header
    _
  $region3: #{conv_bn_lrelu.2} parent=0 // loop_header
    %s10 = sphi 0, %s14
    %p11 = scmp.ge.s32.totalorder %s10, 4
    %s20 = sphi 0, %s22
    %s23 = sphi 0, %s20
    %s24 = sphi 0, %s23
    %s40 = sphi 0, %s24
    %s44 = sphi 0, %s44
    %s46 = sphi 0, %s44
    %s47 = sphi 0, %s46
    %s61 = sphi 0, %s47
    %s67 = sphi 0, %s69
    %s70 = sphi 0, %s67
    %s71 = sphi 0, %s70
    %s87 = sphi 0, %s71
    %s93 = sphi 0, %s95
    %s96 = sphi 0, %s93
    %s97 = sphi 0, %s96
    %s113 = sphi 0, %s97
  $region4: #{conv_bn_lrelu.2} parent=0 // loop_header_branch
    %13 = sbr.rel (%p11) target = $region8
  $region5: #{conv_bn_lrelu.2} parent=0 // loop_body
    %s15 = ssub.s32 %s10, 1
    %s16 = ssub.s32 %s10, 2
    %s17 = sadd.s32 %s10, 1
    %s18 = ssub.s32 %s10, %s17
    %p19 = scmp.eq.s32.totalorder %s18, 0
    %s21 = sadd.s32 %s20, 1
    %s22 = scalar_select %p19, %s20, %s21
    %p25 = pneg %p19
    %p26 = scmp.eq.s32.totalorder %s10, 1
    %p27 = por %p25, %p26
    %p28 = scmp.ne.s32.totalorder %s20, %s23
    %p29 = scmp.eq.s32.totalorder %s10, 0
    %p30 = por %p28, %p29
    %p31 = scmp.ne.s32.totalorder %s20, %s23
    %p32 = scmp.eq.s32.totalorder %s15, 1
    %p33 = por %p31, %p32
    %p34 = scmp.ne.s32.totalorder %s23, %s24
    %p35 = scmp.eq.s32.totalorder %s15, 0
    %p36 = por %p34, %p35
    %p37 = scmp.ne.s32.totalorder %s23, %s24
    %p38 = scmp.eq.s32.totalorder %s16, 1
    %p39 = por %p37, %p38
    %p41 = scmp.ne.s32.totalorder %s24, %s40
    %p42 = scmp.eq.s32.totalorder %s16, 0
    %p43 = por %p41, %p42
    %s45 = sadd.s32 %s44, 1
    %p48 = scmp.eq.s32.totalorder %s10, 1
    %p49 = scmp.ne.s32.totalorder %s44, %s46
    %p50 = scmp.eq.s32.totalorder %s10, 0
    %p51 = por %p49, %p50
    %p52 = scmp.ne.s32.totalorder %s44, %s46
    %p53 = scmp.eq.s32.totalorder %s15, 1
    %p54 = por %p52, %p53
    %p55 = scmp.ne.s32.totalorder %s46, %s47
    %p56 = scmp.eq.s32.totalorder %s15, 0
    %p57 = por %p55, %p56
    %p58 = scmp.ne.s32.totalorder %s46, %s47
    %p59 = scmp.eq.s32.totalorder %s16, 1
    %p60 = por %p58, %p59
    %p62 = scmp.ne.s32.totalorder %s47, %s61
    %p63 = scmp.eq.s32.totalorder %s16, 0
    %p64 = por %p62, %p63
    %s65 = ssub.s32 %s10, %s17
    %p66 = scmp.eq.s32.totalorder %s65, 0
    %s68 = sadd.s32 %s67, 1
    %s69 = scalar_select %p66, %s67, %s68
    %p72 = pneg %p66
    %p73 = scmp.eq.s32.totalorder %s10, 1
    %p74 = por %p72, %p73
    %p75 = scmp.ne.s32.totalorder %s67, %s70
    %p76 = scmp.eq.s32.totalorder %s10, 0
    %p77 = por %p75, %p76
    %p78 = scmp.ne.s32.totalorder %s67, %s70
    %p79 = scmp.eq.s32.totalorder %s15, 1
    %p80 = por %p78, %p79
    %p81 = scmp.ne.s32.totalorder %s70, %s71
    %p82 = scmp.eq.s32.totalorder %s15, 0
    %p83 = por %p81, %p82
    %p84 = scmp.ne.s32.totalorder %s70, %s71
    %p85 = scmp.eq.s32.totalorder %s16, 1
    %p86 = por %p84, %p85
    %p88 = scmp.ne.s32.totalorder %s71, %s87
    %p89 = scmp.eq.s32.totalorder %s16, 0
    %p90 = por %p88, %p89
    %s91 = ssub.s32 %s10, %s17
    %p92 = scmp.eq.s32.totalorder %s91, 0
    %s94 = sadd.s32 %s93, 1
    %s95 = scalar_select %p92, %s93, %s94
    %p98 = pneg %p92
    %p99 = scmp.eq.s32.totalorder %s10, 1
    %p100 = por %p98, %p99
    %p101 = scmp.ne.s32.totalorder %s93, %s96
    %p102 = scmp.eq.s32.totalorder %s10, 0
    %p103 = por %p101, %p102
    %p104 = scmp.ne.s32.totalorder %s93, %s96
    %p105 = scmp.eq.s32.totalorder %s15, 1
    %p106 = por %p104, %p105
    %p107 = scmp.ne.s32.totalorder %s96, %s97
    %p108 = scmp.eq.s32.totalorder %s15, 0
    %p109 = por %p107, %p108
    %p110 = scmp.ne.s32.totalorder %s96, %s97
    %p111 = scmp.eq.s32.totalorder %s16, 1
    %p112 = por %p110, %p111
    %p114 = scmp.ne.s32.totalorder %s97, %s113
    %p115 = scmp.eq.s32.totalorder %s16, 0
    %p116 = por %p114, %p115
    %p117 = scmp.le.s32.totalorder 1, %s10
    %p118 = scmp.lt.s32.totalorder %s10, 3
    %p119 = pnand %p117, %p118
    %p120 = pneg %p119
    // Predicated region
    $region9: #{conv_bn_lrelu.2} parent=5 // pred_check
      _
    $region10: #{conv_bn_lrelu.2} parent=5 // pred_check_branch
      %122 = sbr.rel (%p119) target = $region12
    $region11: #{conv_bn_lrelu.2} parent=5 // pred_region
      %s123 = ssub.s32 %s10, 1
      // Predicated region
      $region13: #{conv_bn_lrelu.2} parent=11 // pred_check
        %p124 = pneg %p57
      $region14: #{conv_bn_lrelu.2} parent=11 // pred_check_branch
        %126 = sbr.rel (%p124) target = $region16
      $region15: #{conv_bn_lrelu.2} parent=11 // pred_region
        _
      $region16: #{conv_bn_lrelu.2} parent=11 // pred_fallthru
        _
    $region12: #{conv_bn_lrelu.2} parent=5 // pred_fallthru
      _
    %p127 = scmp.lt.s32.totalorder %s10, 2
    // Predicated region
    $region17: #{conv_bn_lrelu.2} parent=5 // pred_check
      %p128 = pneg %p127
    $region18: #{conv_bn_lrelu.2} parent=5 // pred_check_branch
      %130 = sbr.rel (%p128) target = $region20
    $region19: #{conv_bn_lrelu.2} parent=5 // pred_region
      // Predicated region
      $region21: #{conv_bn_lrelu.2} parent=19 // pred_check
        %p131 = pneg %p30
      $region22: #{conv_bn_lrelu.2} parent=19 // pred_check_branch
        %133 = sbr.rel (%p131) target = $region24
      $region23: #{conv_bn_lrelu.2} parent=19 // pred_region
        %p134 = scmp.lt.s32.totalorder %s10, 1
        %s135 = scalar_select %p134, %s10, 1
        %s136 = smul.addr %s135, 18
        %s137 = smul.addr %s136, 4
        %s138 = scalar_lea.vmem %s0, %s137
      $region24: #{conv_bn_lrelu.2} parent=19 // pred_fallthru
        _
    $region20: #{conv_bn_lrelu.2} parent=5 // pred_fallthru
      _
    %p139 = scmp.le.s32.totalorder 1, %s10
    %p140 = scmp.lt.s32.totalorder %s10, 3
    %p141 = pnand %p139, %p140
    %p142 = pneg %p141
    // Predicated region
    $region25: #{conv_bn_lrelu.2} parent=5 // pred_check
      _
    $region26: #{conv_bn_lrelu.2} parent=5 // pred_check_branch
      %144 = sbr.rel (%p141) target = $region28
    $region27: #{conv_bn_lrelu.2} parent=5 // pred_region
      %s145 = ssub.s32 %s10, 1
      %p146 = scmp.lt.s32.totalorder %s15, 1
      %s147 = scalar_select %p146, %s15, 1
      %s148 = smul.addr %s147, 18
      %s149 = smul.addr %s148, 4
      %s150 = scalar_lea.vmem %s0, %s149
      %p151 = pneg %p36
      %p152 = pneg %p33
      %p153 = pneg %p57
      %p154 = pneg %p54
      %p155 = pneg %p83
      %p156 = pneg %p80
      %s157 = smul.u32 8, %s15
      %p158 = scmp.lt.s32.totalorder %s157, 15
      %s159 = scalar_select %p158, %s157, 15
      %s160 = smul.addr %s159, 4
      %s161 = scalar_lea.vmem %s2, %s160
      %p162 = pneg %p109
      %p163 = pneg %p106
      %p164 = scmp.lt.s32.totalorder %s15, 1
      %s165 = scalar_select %p164, %s15, 1
      %s166 = smul.addr %s165, 2
      %s167 = scalar_lea.vmem %s3, %s166
      %p168 = scmp.lt.s32.totalorder %s15, 1
      %s169 = scalar_select %p168, %s15, 1
      %s170 = smul.addr %s169, 18
      %s171 = smul.addr %s170, 4
      %s172 = scalar_lea.vmem %s0, %s171
      %s173 = smul.u32 8, %s15
      %p174 = scmp.lt.s32.totalorder %s173, 15
      %s175 = scalar_select %p174, %s173, 15
      %s176 = smul.addr %s175, 4
      %s177 = scalar_lea.vmem %s2, %s176
      %s178 = smul.u32 8, %s15
      %p179 = scmp.lt.s32.totalorder %s15, 1
      %s180 = scalar_select %p179, %s15, 1
      %s181 = smul.addr %s180, 2
      %s182 = scalar_lea.vmem %s3, %s181
      %v184 = vld [vmem:[%s172] sm:$0xf]
      %v185 = vld [vmem:[%s172 + $0x8] sm:$0xf]
      %v186 = vld [vmem:[%s172 + $0x10] sm:$0xf]
      %v187 = vld [vmem:[%s172 + $0x18] sm:$0xf]
      %v188 = vld [vmem:[%s172 + $0x20] sm:$0xf]
      %v189 = vld [vmem:[%s172 + $0x28] sm:$0xf]
      %v190 = vld [vmem:[%s172 + $0x30] sm:$0xf]
      %v191 = vld [vmem:[%s172 + $0x38] sm:$0xf]
      %v192 = vld [vmem:[%s172 + $0x4] sm:$0x1]
      %v193 = vld [vmem:[%s172 + $0xc] sm:$0x1]
      %v194 = vld [vmem:[%s172 + $0x14] sm:$0x1]
      %v195 = vld [vmem:[%s172 + $0x1c] sm:$0x1]
      %v196 = vld [vmem:[%s172 + $0x24] sm:$0x1]
      %v197 = vld [vmem:[%s172 + $0x2c] sm:$0x1]
      %v198 = vld [vmem:[%s172 + $0x34] sm:$0x1]
      %v199 = vld [vmem:[%s172 + $0x3c] sm:$0x1]
      %vm200 = vsmask.f32 3328
      %vm201 = vsmask.f32 7440
      %vm202 = vmor %vm200, %vm201
      %v204 = vshrl.u32 %v184, 16
      %v206 = vrot.slane %v204, 4
      %v207 = vshll.u32 %v184, 16
      %v209 = vrot.slane %v207, 5
      %v210 = vor.u32 %v206, %v209
      %v211 = vrot.slane %v210, 4
      %v213 = vshll.u32 %v192, 16
      %v215 = vrot.slane %v213, 5
      %v216 = vsel %vm202, %v211, %v215
      %v218 = vshrl.u32 %v185, 16
      %v220 = vrot.slane %v218, 4
      %v221 = vshll.u32 %v185, 16
      %v223 = vrot.slane %v221, 5
      %v224 = vor.u32 %v220, %v223
      %v225 = vrot.slane %v224, 4
      %v227 = vshll.u32 %v193, 16
      %v229 = vrot.slane %v227, 5
      %v230 = vsel %vm202, %v225, %v229
      %v232 = vshrl.u32 %v186, 16
      %v234 = vrot.slane %v232, 4
      %v235 = vshll.u32 %v186, 16
      %v237 = vrot.slane %v235, 5
      %v238 = vor.u32 %v234, %v237
      %v239 = vrot.slane %v238, 4
      %v241 = vshll.u32 %v194, 16
      %v243 = vrot.slane %v241, 5
      %v244 = vsel %vm202, %v239, %v243
      %v246 = vshrl.u32 %v187, 16
      %v248 = vrot.slane %v246, 4
      %v249 = vshll.u32 %v187, 16
      %v251 = vrot.slane %v249, 5
      %v252 = vor.u32 %v248, %v251
      %v253 = vrot.slane %v252, 4
      %v255 = vshll.u32 %v195, 16
      %v257 = vrot.slane %v255, 5
      %v258 = vsel %vm202, %v253, %v257
      %v260 = vshrl.u32 %v188, 16
      %v262 = vrot.slane %v260, 4
      %v263 = vshll.u32 %v188, 16
      %v265 = vrot.slane %v263, 5
      %v266 = vor.u32 %v262, %v265
      %v267 = vrot.slane %v266, 4
      %v269 = vshll.u32 %v196, 16
      %v271 = vrot.slane %v269, 5
      %v272 = vsel %vm202, %v267, %v271
      %v274 = vshrl.u32 %v189, 16
      %v276 = vrot.slane %v274, 4
      %v277 = vshll.u32 %v189, 16
      %v279 = vrot.slane %v277, 5
      %v280 = vor.u32 %v276, %v279
      %v281 = vrot.slane %v280, 4
      %v283 = vshll.u32 %v197, 16
      %v285 = vrot.slane %v283, 5
      %v286 = vsel %vm202, %v281, %v285
      %v288 = vshrl.u32 %v190, 16
      %v290 = vrot.slane %v288, 4
      %v291 = vshll.u32 %v190, 16
      %v293 = vrot.slane %v291, 5
      %v294 = vor.u32 %v290, %v293
      %v295 = vrot.slane %v294, 4
      %v297 = vshll.u32 %v198, 16
      %v299 = vrot.slane %v297, 5
      %v300 = vsel %vm202, %v295, %v299
      %v302 = vshrl.u32 %v191, 16
      %v304 = vrot.slane %v302, 4
      %v305 = vshll.u32 %v191, 16
      %v307 = vrot.slane %v305, 5
      %v308 = vor.u32 %v304, %v307
      %v309 = vrot.slane %v308, 4
      %v311 = vshll.u32 %v199, 16
      %v313 = vrot.slane %v311, 5
      %v314 = vsel %vm202, %v309, %v313
      %s315 = scalar_lea.vmem %s172, 8
      %v316 = vld [vmem:[%s315] sm:$0xf]
      %v317 = vld [vmem:[%s315 + $0x8] sm:$0xf]
      %v318 = vld [vmem:[%s315 + $0x10] sm:$0xf]
      %v319 = vld [vmem:[%s315 + $0x18] sm:$0xf]
      %v320 = vld [vmem:[%s315 + $0x20] sm:$0xf]
      %v321 = vld [vmem:[%s315 + $0x28] sm:$0xf]
      %v322 = vld [vmem:[%s315 + $0x30] sm:$0xf]
      %v323 = vld [vmem:[%s315 + $0x38] sm:$0xf]
      %v324 = vld [vmem:[%s315 + $0x4] sm:$0x1]
      %v325 = vld [vmem:[%s315 + $0xc] sm:$0x1]
      %v326 = vld [vmem:[%s315 + $0x14] sm:$0x1]
      %v327 = vld [vmem:[%s315 + $0x1c] sm:$0x1]
      %v328 = vld [vmem:[%s315 + $0x24] sm:$0x1]
      %v329 = vld [vmem:[%s315 + $0x2c] sm:$0x1]
      %v330 = vld [vmem:[%s315 + $0x34] sm:$0x1]
      %v331 = vld [vmem:[%s315 + $0x3c] sm:$0x1]
      %v333 = vshrl.u32 %v316, 16
      %v335 = vrot.slane %v333, 4
      %v336 = vshll.u32 %v316, 16
      %v338 = vrot.slane %v336, 5
      %v339 = vor.u32 %v335, %v338
      %v340 = vrot.slane %v339, 4
      %v342 = vshll.u32 %v324, 16
      %v344 = vrot.slane %v342, 5
      %v345 = vsel %vm202, %v340, %v344
      %v347 = vshrl.u32 %v317, 16
      %v349 = vrot.slane %v347, 4
      %v350 = vshll.u32 %v317, 16
      %v352 = vrot.slane %v350, 5
      %v353 = vor.u32 %v349, %v352
      %v354 = vrot.slane %v353, 4
      %v356 = vshll.u32 %v325, 16
      %v358 = vrot.slane %v356, 5
      %v359 = vsel %vm202, %v354, %v358
      %v361 = vshrl.u32 %v318, 16
      %v363 = vrot.slane %v361, 4
      %v364 = vshll.u32 %v318, 16
      %v366 = vrot.slane %v364, 5
      %v367 = vor.u32 %v363, %v366
      %v368 = vrot.slane %v367, 4
      %v370 = vshll.u32 %v326, 16
      %v372 = vrot.slane %v370, 5
      %v373 = vsel %vm202, %v368, %v372
      %v375 = vshrl.u32 %v319, 16
      %v377 = vrot.slane %v375, 4
      %v378 = vshll.u32 %v319, 16
      %v380 = vrot.slane %v378, 5
      %v381 = vor.u32 %v377, %v380
      %v382 = vrot.slane %v381, 4
      %v384 = vshll.u32 %v327, 16
      %v386 = vrot.slane %v384, 5
      %v387 = vsel %vm202, %v382, %v386
      %v389 = vshrl.u32 %v320, 16
      %v391 = vrot.slane %v389, 4
      %v392 = vshll.u32 %v320, 16
      %v394 = vrot.slane %v392, 5
      %v395 = vor.u32 %v391, %v394
      %v396 = vrot.slane %v395, 4
      %v398 = vshll.u32 %v328, 16
      %v400 = vrot.slane %v398, 5
      %v401 = vsel %vm202, %v396, %v400
      %v403 = vshrl.u32 %v321, 16
      %v405 = vrot.slane %v403, 4
      %v406 = vshll.u32 %v321, 16
      %v408 = vrot.slane %v406, 5
      %v409 = vor.u32 %v405, %v408
      %v410 = vrot.slane %v409, 4
      %v412 = vshll.u32 %v329, 16
      %v414 = vrot.slane %v412, 5
      %v415 = vsel %vm202, %v410, %v414
      %v417 = vshrl.u32 %v322, 16
      %v419 = vrot.slane %v417, 4
      %v420 = vshll.u32 %v322, 16
      %v422 = vrot.slane %v420, 5
      %v423 = vor.u32 %v419, %v422
      %v424 = vrot.slane %v423, 4
      %v426 = vshll.u32 %v330, 16
      %v428 = vrot.slane %v426, 5
      %v429 = vsel %vm202, %v424, %v428
      %v431 = vshrl.u32 %v323, 16
      %v433 = vrot.slane %v431, 4
      %v434 = vshll.u32 %v323, 16
      %v436 = vrot.slane %v434, 5
      %v437 = vor.u32 %v433, %v436
      %v438 = vrot.slane %v437, 4
      %v440 = vshll.u32 %v331, 16
      %v442 = vrot.slane %v440, 5
      %v443 = vsel %vm202, %v438, %v442
      %v452 = vunpack.c.l.b16 %v184
      %v453 = vunpack.c.l.b16 %v185
      %v454 = vunpack.c.l.b16 %v186
      %v455 = vunpack.c.l.b16 %v187
      %v456 = vunpack.c.l.b16 %v188
      %v457 = vunpack.c.l.b16 %v189
      %v458 = vunpack.c.l.b16 %v190
      %v459 = vunpack.c.l.b16 %v191
      %v460 = vpack.c.b16 %v453, %v452
      %v461 = vpack.c.b16 %v455, %v454
      %v462 = vpack.c.b16 %v457, %v456
      %v463 = vpack.c.b16 %v459, %v458
      %v468 = vunpack.c.l.b16 %v216
      %v469 = vunpack.c.l.b16 %v230
      %v470 = vunpack.c.l.b16 %v244
      %v471 = vunpack.c.l.b16 %v258
      %v472 = vunpack.c.l.b16 %v272
      %v473 = vunpack.c.l.b16 %v286
      %v474 = vunpack.c.l.b16 %v300
      %v475 = vunpack.c.l.b16 %v314
      %v476 = vpack.c.b16 %v469, %v468
      %v477 = vpack.c.b16 %v471, %v470
      %v478 = vpack.c.b16 %v473, %v472
      %v479 = vpack.c.b16 %v475, %v474
      %v492 = vunpack.c.l.b16 %v316
      %v493 = vunpack.c.l.b16 %v317
      %v494 = vunpack.c.l.b16 %v318
      %v495 = vunpack.c.l.b16 %v319
      %v496 = vunpack.c.l.b16 %v320
      %v497 = vunpack.c.l.b16 %v321
      %v498 = vunpack.c.l.b16 %v322
      %v499 = vunpack.c.l.b16 %v323
      %v500 = vpack.c.b16 %v493, %v492
      %v501 = vpack.c.b16 %v495, %v494
      %v502 = vpack.c.b16 %v497, %v496
      %v503 = vpack.c.b16 %v499, %v498
      %v508 = vunpack.c.l.b16 %v345
      %v509 = vunpack.c.l.b16 %v359
      %v510 = vunpack.c.l.b16 %v373
      %v511 = vunpack.c.l.b16 %v387
      %v512 = vunpack.c.l.b16 %v401
      %v513 = vunpack.c.l.b16 %v415
      %v514 = vunpack.c.l.b16 %v429
      %v515 = vunpack.c.l.b16 %v443
      %v516 = vpack.c.b16 %v509, %v508
      %v517 = vpack.c.b16 %v511, %v510
      %v518 = vpack.c.b16 %v513, %v512
      %v519 = vpack.c.b16 %v515, %v514
      %v524 = vld [vmem:[%s1] sm:$0xf]
      %v525 = vld [vmem:[%s1 + $0x4] sm:$0xf]
      %v526 = vld [vmem:[%s1 + $0x8] sm:$0xf]
      %v527 = vld [vmem:[%s1 + $0xc] sm:$0xf]
      %v528 = vld [vmem:[%s1 + $0x10] sm:$0xf]
      %v529 = vld [vmem:[%s1 + $0x14] sm:$0xf]
      %v530 = vld [vmem:[%s1 + $0x18] sm:$0xf]
      %v531 = vld [vmem:[%s1 + $0x1c] sm:$0xf]
      %v532 = vld [vmem:[%s1 + $0x20] sm:$0xf]
      %v533 = vld [vmem:[%s1 + $0x24] sm:$0xf]
      %v534 = vld [vmem:[%s1 + $0x28] sm:$0xf]
      %v535 = vld [vmem:[%s1 + $0x2c] sm:$0xf]
      %v536 = vld [vmem:[%s1 + $0x30] sm:$0xf]
      %v537 = vld [vmem:[%s1 + $0x34] sm:$0xf]
      %v538 = vld [vmem:[%s1 + $0x38] sm:$0xf]
      %v539 = vld [vmem:[%s1 + $0x3c] sm:$0xf]
      %v540 = vld [vmem:[%s1 + $0x40] sm:$0xf]
      %v541 = vld [vmem:[%s1 + $0x44] sm:$0xf]
      %v542 = vld [vmem:[%s1 + $0x48] sm:$0xf]
      %v543 = vld [vmem:[%s1 + $0x4c] sm:$0xf]
      %v544 = vld [vmem:[%s1 + $0x50] sm:$0xf]
      %v545 = vld [vmem:[%s1 + $0x54] sm:$0xf]
      %v546 = vld [vmem:[%s1 + $0x58] sm:$0xf]
      %v547 = vld [vmem:[%s1 + $0x5c] sm:$0xf]
      %v548 = vld [vmem:[%s1 + $0x60] sm:$0xf]
      %v549 = vld [vmem:[%s1 + $0x64] sm:$0xf]
      %v550 = vld [vmem:[%s1 + $0x68] sm:$0xf]
      %v551 = vld [vmem:[%s1 + $0x6c] sm:$0xf]
      %v552 = vld [vmem:[%s1 + $0x70] sm:$0xf]
      %v553 = vld [vmem:[%s1 + $0x74] sm:$0xf]
      %v554 = vld [vmem:[%s1 + $0x78] sm:$0xf]
      %v555 = vld [vmem:[%s1 + $0x7c] sm:$0xf]
      %v556 = vld [vmem:[%s1 + $0x80] sm:$0xf]
      %v557 = vld [vmem:[%s1 + $0x84] sm:$0xf]
      %v558 = vld [vmem:[%s1 + $0x88] sm:$0xf]
      %v559 = vld [vmem:[%s1 + $0x8c] sm:$0xf]
      %v560 = vld [vmem:[%s1 + $0x90] sm:$0xf]
      %v561 = vld [vmem:[%s1 + $0x94] sm:$0xf]
      %v562 = vld [vmem:[%s1 + $0x98] sm:$0xf]
      %v563 = vld [vmem:[%s1 + $0x9c] sm:$0xf]
      %v564 = vld [vmem:[%s1 + $0xa0] sm:$0xf]
      %v565 = vld [vmem:[%s1 + $0xa4] sm:$0xf]
      %v566 = vld [vmem:[%s1 + $0xa8] sm:$0xf]
      %v567 = vld [vmem:[%s1 + $0xac] sm:$0xf]
      %v568 = vld [vmem:[%s1 + $0xb0] sm:$0xf]
      %v569 = vld [vmem:[%s1 + $0xb4] sm:$0xf]
      %v570 = vld [vmem:[%s1 + $0xb8] sm:$0xf]
      %v571 = vld [vmem:[%s1 + $0xbc] sm:$0xf]
      %v572 = vld [vmem:[%s1 + $0xc0] sm:$0xf]
      %v573 = vld [vmem:[%s1 + $0xc4] sm:$0xf]
      %v574 = vld [vmem:[%s1 + $0xc8] sm:$0xf]
      %v575 = vld [vmem:[%s1 + $0xcc] sm:$0xf]
      %v576 = vld [vmem:[%s1 + $0xd0] sm:$0xf]
      %v577 = vld [vmem:[%s1 + $0xd4] sm:$0xf]
      %v578 = vld [vmem:[%s1 + $0xd8] sm:$0xf]
      %v579 = vld [vmem:[%s1 + $0xdc] sm:$0xf]
      %v580 = vld [vmem:[%s1 + $0xe0] sm:$0xf]
      %v581 = vld [vmem:[%s1 + $0xe4] sm:$0xf]
      %v582 = vld [vmem:[%s1 + $0xe8] sm:$0xf]
      %v583 = vld [vmem:[%s1 + $0xec] sm:$0xf]
      %v584 = vld [vmem:[%s1 + $0xf0] sm:$0xf]
      %v585 = vld [vmem:[%s1 + $0xf4] sm:$0xf]
      %v586 = vld [vmem:[%s1 + $0xf8] sm:$0xf]
      %v587 = vld [vmem:[%s1 + $0xfc] sm:$0xf]
      %v652 = vunpack.c.l.b16 %v524
      %v653 = vunpack.c.l.b16 %v525
      %v654 = vunpack.c.l.b16 %v526
      %v655 = vunpack.c.l.b16 %v527
      %v656 = vunpack.c.l.b16 %v528
      %v657 = vunpack.c.l.b16 %v529
      %v658 = vunpack.c.l.b16 %v530
      %v659 = vunpack.c.l.b16 %v531
      %v660 = vunpack.c.l.b16 %v532
      %v661 = vunpack.c.l.b16 %v533
      %v662 = vunpack.c.l.b16 %v534
      %v663 = vunpack.c.l.b16 %v535
      %v664 = vunpack.c.l.b16 %v536
      %v665 = vunpack.c.l.b16 %v537
      %v666 = vunpack.c.l.b16 %v538
      %v667 = vunpack.c.l.b16 %v539
      %v668 = vunpack.c.l.b16 %v540
      %v669 = vunpack.c.l.b16 %v541
      %v670 = vunpack.c.l.b16 %v542
      %v671 = vunpack.c.l.b16 %v543
      %v672 = vunpack.c.l.b16 %v544
      %v673 = vunpack.c.l.b16 %v545
      %v674 = vunpack.c.l.b16 %v546
      %v675 = vunpack.c.l.b16 %v547
      %v676 = vunpack.c.l.b16 %v548
      %v677 = vunpack.c.l.b16 %v549
      %v678 = vunpack.c.l.b16 %v550
      %v679 = vunpack.c.l.b16 %v551
      %v680 = vunpack.c.l.b16 %v552
      %v681 = vunpack.c.l.b16 %v553
      %v682 = vunpack.c.l.b16 %v554
      %v683 = vunpack.c.l.b16 %v555
      %v684 = vunpack.c.l.b16 %v556
      %v685 = vunpack.c.l.b16 %v557
      %v686 = vunpack.c.l.b16 %v558
      %v687 = vunpack.c.l.b16 %v559
      %v688 = vunpack.c.l.b16 %v560
      %v689 = vunpack.c.l.b16 %v561
      %v690 = vunpack.c.l.b16 %v562
      %v691 = vunpack.c.l.b16 %v563
      %v692 = vunpack.c.l.b16 %v564
      %v693 = vunpack.c.l.b16 %v565
      %v694 = vunpack.c.l.b16 %v566
      %v695 = vunpack.c.l.b16 %v567
      %v696 = vunpack.c.l.b16 %v568
      %v697 = vunpack.c.l.b16 %v569
      %v698 = vunpack.c.l.b16 %v570
      %v699 = vunpack.c.l.b16 %v571
      %v700 = vunpack.c.l.b16 %v572
      %v701 = vunpack.c.l.b16 %v573
      %v702 = vunpack.c.l.b16 %v574
      %v703 = vunpack.c.l.b16 %v575
      %v704 = vunpack.c.l.b16 %v576
      %v705 = vunpack.c.l.b16 %v577
      %v706 = vunpack.c.l.b16 %v578
      %v707 = vunpack.c.l.b16 %v579
      %v708 = vunpack.c.l.b16 %v580
      %v709 = vunpack.c.l.b16 %v581
      %v710 = vunpack.c.l.b16 %v582
      %v711 = vunpack.c.l.b16 %v583
      %v712 = vunpack.c.l.b16 %v584
      %v713 = vunpack.c.l.b16 %v585
      %v714 = vunpack.c.l.b16 %v586
      %v715 = vunpack.c.l.b16 %v587
      %v716 = vpack.c.b16 %v653, %v652
      %v717 = vpack.c.b16 %v655, %v654
      %v718 = vpack.c.b16 %v657, %v656
      %v719 = vpack.c.b16 %v659, %v658
      %v720 = vpack.c.b16 %v661, %v660
      %v721 = vpack.c.b16 %v663, %v662
      %v722 = vpack.c.b16 %v665, %v664
      %v723 = vpack.c.b16 %v667, %v666
      %v724 = vpack.c.b16 %v669, %v668
      %v725 = vpack.c.b16 %v671, %v670
      %v726 = vpack.c.b16 %v673, %v672
      %v727 = vpack.c.b16 %v675, %v674
      %v728 = vpack.c.b16 %v677, %v676
      %v729 = vpack.c.b16 %v679, %v678
      %v730 = vpack.c.b16 %v681, %v680
      %v731 = vpack.c.b16 %v683, %v682
      %v732 = vpack.c.b16 %v685, %v684
      %v733 = vpack.c.b16 %v687, %v686
      %v734 = vpack.c.b16 %v689, %v688
      %v735 = vpack.c.b16 %v691, %v690
      %v736 = vpack.c.b16 %v693, %v692
      %v737 = vpack.c.b16 %v695, %v694
      %v738 = vpack.c.b16 %v697, %v696
      %v739 = vpack.c.b16 %v699, %v698
      %v740 = vpack.c.b16 %v701, %v700
      %v741 = vpack.c.b16 %v703, %v702
      %v742 = vpack.c.b16 %v705, %v704
      %v743 = vpack.c.b16 %v707, %v706
      %v744 = vpack.c.b16 %v709, %v708
      %v745 = vpack.c.b16 %v711, %v710
      %v746 = vpack.c.b16 %v713, %v712
      %v747 = vpack.c.b16 %v715, %v714
      %780 = vmatprep.subr.bf16.mxu0 0
      %781 = vmatpush1.bf16.msra.mxu0 %v716
      %782 = vmatprep.subr.bf16.mxu0 0
      %783 = vmatpush1.bf16.msra.mxu0 %v717
      %784 = vmatprep.subr.bf16.mxu0 0
      %785 = vmatpush1.bf16.msra.mxu0 %v718
      %786 = vmatprep.subr.bf16.mxu0 0
      %787 = vmatpush1.bf16.msra.mxu0 %v719
      %788 = vmatprep.subr.bf16.mxu0 0
      %789 = vmatpush1.bf16.msra.mxu0 %v720
      %790 = vmatprep.subr.bf16.mxu0 0
      %791 = vmatpush1.bf16.msra.mxu0 %v721
      %792 = vmatprep.subr.bf16.mxu0 0
      %793 = vmatpush1.bf16.msra.mxu0 %v722
      %794 = vmatprep.subr.bf16.mxu0 0
      %795 = vmatpush1.bf16.msra.mxu0 %v723
      %796 = vmatprep.subr.bf16.mxu0 0
      %797 = vmatpush1.bf16.msra.mxu0 %v724
      %798 = vmatprep.subr.bf16.mxu0 0
      %799 = vmatpush1.bf16.msra.mxu0 %v725
      %800 = vmatprep.subr.bf16.mxu0 0
      %801 = vmatpush1.bf16.msra.mxu0 %v726
      %802 = vmatprep.subr.bf16.mxu0 0
      %803 = vmatpush1.bf16.msra.mxu0 %v727
      %804 = vmatprep.subr.bf16.mxu0 0
      %805 = vmatpush1.bf16.msra.mxu0 %v728
      %806 = vmatprep.subr.bf16.mxu0 0
      %807 = vmatpush1.bf16.msra.mxu0 %v729
      %808 = vmatprep.subr.bf16.mxu0 0
      %809 = vmatpush1.bf16.msra.mxu0 %v730
      %810 = vmatprep.subr.bf16.mxu0 0
      %811 = vmatpush1.bf16.msra.mxu0 %v731
      %812 = vmatprep.mubr.bf16.mxu0 %v476
      %813 = vmatmul.mubr.bf16.gmra.mrb[0].mxu0 %v460
      %v814 = vpop.f32.mrb[0].mxu0
      %v815 = vadd.f32 0.0, %v814
      %v816 = vpop.f32.mrb[0].mxu0
      %v817 = vpop.f32.mrb[0].mxu0
      %v818 = vadd.f32 0.0, %v817
      %v819 = vpop.f32.mrb[0].mxu0
      %820 = vmatprep.mubr.bf16.mxu0 %v477
      %821 = vmatmul.mubr.bf16.gmra.mrb[0].mxu0 %v461
      %v822 = vpop.f32.mrb[0].mxu0
      %v823 = vadd.f32 0.0, %v822
      %v824 = vpop.f32.mrb[0].mxu0
      %v825 = vpop.f32.mrb[0].mxu0
      %v826 = vadd.f32 0.0, %v825
      %v827 = vpop.f32.mrb[0].mxu0
      %828 = vmatprep.mubr.bf16.mxu0 %v478
      %829 = vmatmul.mubr.bf16.gmra.mrb[0].mxu0 %v462
      %v830 = vpop.f32.mrb[0].mxu0
      %v831 = vadd.f32 0.0, %v830
      %v832 = vpop.f32.mrb[0].mxu0
      %v833 = vpop.f32.mrb[0].mxu0
      %v834 = vadd.f32 0.0, %v833
      %v835 = vpop.f32.mrb[0].mxu0
      %836 = vmatprep.mubr.bf16.mxu0 %v479
      %837 = vmatmul.mubr.bf16.gmra.mrb[0].mxu0 %v463
      %v838 = vpop.f32.mrb[0].mxu0
      %v839 = vadd.f32 0.0, %v838
      %v840 = vpop.f32.mrb[0].mxu0
      %v841 = vpop.f32.mrb[0].mxu0
      %v842 = vadd.f32 0.0, %v841
      %v843 = vpop.f32.mrb[0].mxu0
      %844 = vdwg.mxu0
      %845 = vmatprep.subr.bf16.mxu0 0
      %846 = vmatpush1.bf16.msra.mxu0 %v732
      %847 = vmatprep.subr.bf16.mxu0 0
      %848 = vmatpush1.bf16.msra.mxu0 %v733
      %849 = vmatprep.subr.bf16.mxu0 0
      %850 = vmatpush1.bf16.msra.mxu0 %v734
      %851 = vmatprep.subr.bf16.mxu0 0
      %852 = vmatpush1.bf16.msra.mxu0 %v735
      %853 = vmatprep.subr.bf16.mxu0 0
      %854 = vmatpush1.bf16.msra.mxu0 %v736
      %855 = vmatprep.subr.bf16.mxu0 0
      %856 = vmatpush1.bf16.msra.mxu0 %v737
      %857 = vmatprep.subr.bf16.mxu0 0
      %858 = vmatpush1.bf16.msra.mxu0 %v738
      %859 = vmatprep.subr.bf16.mxu0 0
      %860 = vmatpush1.bf16.msra.mxu0 %v739
      %861 = vmatprep.subr.bf16.mxu0 0
      %862 = vmatpush1.bf16.msra.mxu0 %v740
      %863 = vmatprep.subr.bf16.mxu0 0
      %864 = vmatpush1.bf16.msra.mxu0 %v741
      %865 = vmatprep.subr.bf16.mxu0 0
      %866 = vmatpush1.bf16.msra.mxu0 %v742
      %867 = vmatprep.subr.bf16.mxu0 0
      %868 = vmatpush1.bf16.msra.mxu0 %v743
      %869 = vmatprep.subr.bf16.mxu0 0
      %870 = vmatpush1.bf16.msra.mxu0 %v744
      %871 = vmatprep.subr.bf16.mxu0 0
      %872 = vmatpush1.bf16.msra.mxu0 %v745
      %873 = vmatprep.subr.bf16.mxu0 0
      %874 = vmatpush1.bf16.msra.mxu0 %v746
      %875 = vmatprep.subr.bf16.mxu0 0
      %876 = vmatpush1.bf16.msra.mxu0 %v747
      %877 = vmatprep.mubr.bf16.mxu0 %v516
      %878 = vmatmul.mubr.bf16.gmra.mrb[0].mxu0 %v500
      %v879 = vpop.f32.mrb[0].mxu0
      %v880 = vadd.f32 %v815, %v879
      %v881 = vpop.f32.mrb[0].mxu0
      %v882 = vpop.f32.mrb[0].mxu0
      %v883 = vadd.f32 %v818, %v882
      %v884 = vpop.f32.mrb[0].mxu0
      %885 = vmatprep.mubr.bf16.mxu0 %v517
      %886 = vmatmul.mubr.bf16.gmra.mrb[0].mxu0 %v501
      %v887 = vpop.f32.mrb[0].mxu0
      %v888 = vadd.f32 %v823, %v887
      %v889 = vpop.f32.mrb[0].mxu0
      %v890 = vpop.f32.mrb[0].mxu0
      %v891 = vadd.f32 %v826, %v890
      %v892 = vpop.f32.mrb[0].mxu0
      %893 = vmatprep.mubr.bf16.mxu0 %v518
      %894 = vmatmul.mubr.bf16.gmra.mrb[0].mxu0 %v502
      %v895 = vpop.f32.mrb[0].mxu0
      %v896 = vadd.f32 %v831, %v895
      %v897 = vpop.f32.mrb[0].mxu0
      %v898 = vpop.f32.mrb[0].mxu0
      %v899 = vadd.f32 %v834, %v898
      %v900 = vpop.f32.mrb[0].mxu0
      %901 = vmatprep.mubr.bf16.mxu0 %v519
      %902 = vmatmul.mubr.bf16.gmra.mrb[0].mxu0 %v503
      %v903 = vpop.f32.mrb[0].mxu0
      %v904 = vadd.f32 %v839, %v903
      %v905 = vpop.f32.mrb[0].mxu0
      %v906 = vpop.f32.mrb[0].mxu0
      %v907 = vadd.f32 %v842, %v906
      %v908 = vpop.f32.mrb[0].mxu0
      %909 = vdwg.mxu0
      %v910 = vadd.f32 %v880, %v883
      %v911 = vadd.f32 %v910, %v888
      %v912 = vadd.f32 %v911, %v891
      %v913 = vadd.f32 %v912, %v896
      %v914 = vadd.f32 %v913, %v899
      %v915 = vadd.f32 %v914, %v904
      %v916 = vadd.f32 %v915, %v907
      %v917 = vrot.slane %v916, 4
      %v918 = vadd.f32 %v916, %v917
      %v919 = vrot.slane %v918, 2
      %v920 = vadd.f32 %v918, %v919
      %v921 = vrot.slane %v920, 1
      %v922 = vadd.f32 %v920, %v921
      %v923 = vmul.f32 %v880, %v880
      %v924 = vmul.f32 %v883, %v883
      %v925 = vmul.f32 %v888, %v888
      %v926 = vmul.f32 %v891, %v891
      %v927 = vmul.f32 %v896, %v896
      %v928 = vmul.f32 %v899, %v899
      %v929 = vmul.f32 %v904, %v904
      %v930 = vmul.f32 %v907, %v907
      %v931 = vadd.f32 %v923, %v924
      %v932 = vadd.f32 %v931, %v925
      %v933 = vadd.f32 %v932, %v926
      %v934 = vadd.f32 %v933, %v927
      %v935 = vadd.f32 %v934, %v928
      %v936 = vadd.f32 %v935, %v929
      %v937 = vadd.f32 %v936, %v930
      %v938 = vrot.slane %v937, 4
      %v939 = vadd.f32 %v937, %v938
      %v940 = vrot.slane %v939, 2
      %v941 = vadd.f32 %v939, %v940
      %v942 = vrot.slane %v941, 1
      %v943 = vadd.f32 %v941, %v942
      %vm944 = vcmask 1040384
      %v945 = vsel %vm944, %v922, %v943
      %946 = vst [vmem:[%s182] sm:$0x3] %v945
      %v947 = vpack.c.bf16 %v883, %v880
      %v948 = vpack.c.bf16 %v891, %v888
      %v949 = vpack.c.bf16 %v899, %v896
      %v950 = vpack.c.bf16 %v907, %v904
      %v955 = vunpack.c.l.b16 %v947
      %v956 = vunpack.c.h.b16 %v947
      %v957 = vunpack.c.l.b16 %v948
      %v958 = vunpack.c.h.b16 %v948
      %v959 = vunpack.c.l.b16 %v949
      %v960 = vunpack.c.h.b16 %v949
      %v961 = vunpack.c.l.b16 %v950
      %v962 = vunpack.c.h.b16 %v950
      %v963 = vpack.c.b16 %v955, %v955
      %v964 = vpack.c.b16 %v956, %v956
      %v965 = vpack.c.b16 %v957, %v957
      %v966 = vpack.c.b16 %v958, %v958
      %v967 = vpack.c.b16 %v959, %v959
      %v968 = vpack.c.b16 %v960, %v960
      %v969 = vpack.c.b16 %v961, %v961
      %v970 = vpack.c.b16 %v962, %v962
      %979 = vst [vmem:[%s177] sm:$0xf] %v963
      %980 = vst [vmem:[%s177 + $0x4] sm:$0xf] %v964
      %981 = vst [vmem:[%s177 + $0x8] sm:$0xf] %v965
      %982 = vst [vmem:[%s177 + $0xc] sm:$0xf] %v966
      %983 = vst [vmem:[%s177 + $0x10] sm:$0xf] %v967
      %984 = vst [vmem:[%s177 + $0x14] sm:$0xf] %v968
      %985 = vst [vmem:[%s177 + $0x18] sm:$0xf] %v969
      %986 = vst [vmem:[%s177 + $0x1c] sm:$0xf] %v970
      %s987 = smul.u32 8, %s15
      %p988 = scmp.lt.s32.totalorder %s987, 15
      %s989 = scalar_select %p988, %s987, 15
      %s990 = smul.addr %s989, 4
      %s991 = scalar_lea.vmem %s2, %s990
      %p992 = scmp.lt.s32.totalorder %s15, 1
      %s993 = scalar_select %p992, %s15, 1
      %s994 = smul.addr %s993, 2
      %s995 = scalar_lea.vmem %s3, %s994
      // Predicated region
      $region29: #{conv_bn_lrelu.2} parent=27 // pred_check
        %p996 = pneg %p80
      $region30: #{conv_bn_lrelu.2} parent=27 // pred_check_branch
        %998 = sbr.rel (%p996) target = $region32
      $region31: #{conv_bn_lrelu.2} parent=27 // pred_region
        %s999 = smul.u32 8, %s15
      $region32: #{conv_bn_lrelu.2} parent=27 // pred_fallthru
        _
      // Predicated region
      $region33: #{conv_bn_lrelu.2} parent=27 // pred_check
        %p1000 = pneg %p106
      $region34: #{conv_bn_lrelu.2} parent=27 // pred_check_branch
        %1002 = sbr.rel (%p1000) target = $region36
      $region35: #{conv_bn_lrelu.2} parent=27 // pred_region
        _
      $region36: #{conv_bn_lrelu.2} parent=27 // pred_fallthru
        _
    $region28: #{conv_bn_lrelu.2} parent=5 // pred_fallthru
      _
    %p1003 = scmp.le.s32.totalorder 2, %s10
    // Predicated region
    $region37: #{conv_bn_lrelu.2} parent=5 // pred_check
      %p1004 = pneg %p1003
    $region38: #{conv_bn_lrelu.2} parent=5 // pred_check_branch
      %1006 = sbr.rel (%p1004) target = $region40
    $region39: #{conv_bn_lrelu.2} parent=5 // pred_region
      %s1007 = ssub.s32 %s10, 2
      // Predicated region
      $region41: #{conv_bn_lrelu.2} parent=39 // pred_check
        %p1008 = pneg %p86
      $region42: #{conv_bn_lrelu.2} parent=39 // pred_check_branch
        %1010 = sbr.rel (%p1008) target = $region44
      $region43: #{conv_bn_lrelu.2} parent=39 // pred_region
        %s1011 = smul.u32 8, %s16
        %p1012 = scmp.lt.s32.totalorder %s1011, 15
        %s1013 = scalar_select %p1012, %s1011, 15
        %s1014 = smul.addr %s1013, 4
        %s1015 = scalar_lea.vmem %s2, %s1014
      $region44: #{conv_bn_lrelu.2} parent=39 // pred_fallthru
        _
      // Predicated region
      $region45: #{conv_bn_lrelu.2} parent=39 // pred_check
        %p1016 = pneg %p112
      $region46: #{conv_bn_lrelu.2} parent=39 // pred_check_branch
        %1018 = sbr.rel (%p1016) target = $region48
      $region47: #{conv_bn_lrelu.2} parent=39 // pred_region
        %p1019 = scmp.lt.s32.totalorder %s16, 1
        %s1020 = scalar_select %p1019, %s16, 1
        %s1021 = smul.addr %s1020, 2
        %s1022 = scalar_lea.vmem %s3, %s1021
      $region48: #{conv_bn_lrelu.2} parent=39 // pred_fallthru
        _
    $region40: #{conv_bn_lrelu.2} parent=5 // pred_fallthru
      _
  $region6: #{conv_bn_lrelu.2} parent=0 // loop_footer
    %s14 = sadd.s32 1, %s10
  $region7: #{conv_bn_lrelu.2} parent=0 // loop_footer_branch
    %9 = sbr.rel target = $region3
  $region8: #{conv_bn_lrelu.2} parent=0 // loop_exit
    _

</llo_original>
